<compile_context>
chip_gen: v7x
topology: tpu7x:2x2x1
jax: 0.10.0
libtpu: 0.0.40
codegen_flags: <defaults>
</compile_context>

<pallas_src>
import functools
import math

import jax
import jax.numpy as jnp
from jax.experimental import pallas as pl
from jax.experimental.pallas import tpu as pltpu


def _qspa_kernel(x_ref, wqkv_ref, bqkv_ref, wout_ref, bout_ref, out_ref, *,
                 batch_tile, seq, dim):
    bt, L, D = batch_tile, seq, dim
    R = bt * L
    scale = float(D) ** -0.5   # matches torch.tensor(dim).pow(-0.5)

    # ---- qkv projection: (bt*L, 6D) @ (6D, 6D) + bias ----
    x = x_ref[...].astype(jnp.float32).reshape(R, 6 * D)
    y = jnp.dot(x, wqkv_ref[...].astype(jnp.float32),
                preferred_element_type=jnp.float32)
    y = y + bqkv_ref[...].astype(jnp.float32)

    # After the module's view/transpose/chunk the feature layout is simply
    # [q_r | q_i | k_r | k_i | v_r | v_i] along the last axis.
    q_r = y[:, 0 * D:1 * D].reshape(bt, L, D)
    k_r = y[:, 2 * D:3 * D].reshape(bt, L, D)
    v_ri = y[:, 4 * D:6 * D].reshape(bt, L, 2 * D)   # [v_real | v_imag], contiguous

    # ---- attention over the real parts only (as in the module) ----
    scores = jnp.einsum('bqd,bkd->bqk', q_r, k_r,
                        preferred_element_type=jnp.float32) * scale
    m = jnp.max(scores, axis=-1, keepdims=True)
    p = jnp.exp(scores - m)
    attn = p / jnp.sum(p, axis=-1, keepdims=True)
    # TODO(synk): attention dropout (p=0.1) and the optional pad_mask are not
    # implemented; this matches the eval-mode forward with pad_mask=None.

    # Applying attn to [v_r | v_i] at once yields cat([out_real, out_imag], -1).
    o = jnp.einsum('bqk,bkd->bqd', attn, v_ri,
                   preferred_element_type=jnp.float32).reshape(R, 2 * D)

    # ---- output projection ----
    o = jnp.dot(o, wout_ref[...].astype(jnp.float32),
                preferred_element_type=jnp.float32)
    o = o + bout_ref[...].astype(jnp.float32)

    out_real = o[:, :D]
    out_imag = o[:, D:]

    # ---- phase-preservation epilogue ----
    # TODO(synk): the module quantizes atan2(imag, real) through a 1024-entry
    # FastTrigLookup table (and indexes a (dim, 2) buffer that is out of range
    # for dim != 1024).  A data-dependent table gather has no clean Pallas TPU
    # lowering, so we use the exact cos/sin of the phase (pure mul/rsqrt); the
    # deviation is at most one 2*pi/1023 table step.
    xr = out_real + 1e-8
    yi = out_imag + 1e-8
    rinv = jax.lax.rsqrt(xr * xr + yi * yi + 1e-24)
    pres_r = out_real * (xr * rinv)            # out_real * cos(phase)
    pres_i = out_imag * (yi * rinv)            # out_imag * sin(phase)
    # (torch also computes sigmoid(phase_preservation) here but never uses it.)
    n = jax.lax.rsqrt(pres_r * pres_r + pres_i * pres_i + 1e-8)
    res = jnp.concatenate([pres_r * n, pres_i * n], axis=-1)
    out_ref[...] = res.reshape(bt, L, 2 * D).astype(out_ref.dtype)


def quantum_state_preserving_attention(q_real, q_imag, k_real, k_imag,
                                       v_real, v_imag, w_qkv, b_qkv,
                                       w_out, b_out, *, batch_tile=8):
    """Eval-mode forward of QuantumStatePreservingAttention (pad_mask=None).

    q_real..v_imag: (B, L, D).  w_qkv: (6D, 6D), b_qkv: (6D,), w_out: (2D, 2D),
    b_out: (2D,) in torch nn.Linear layout (out_features, in_features).
    Returns (preserved_real, preserved_imag), each (B, L, D).
    """
    B, L, D = q_real.shape
    # Lane-dense packed input slab == the concat fed to the qkv Linear.
    x6 = jnp.concatenate([q_real, q_imag, k_real, k_imag, v_real, v_imag], axis=-1)
    # Hoisted layout plumbing: transpose weights / reshape biases once.
    w_qkv_t = jnp.asarray(w_qkv).T
    w_out_t = jnp.asarray(w_out).T
    b_qkv2 = jnp.asarray(b_qkv).reshape(1, 6 * D)
    b_out2 = jnp.asarray(b_out).reshape(1, 2 * D)

    bt = max(1, math.gcd(int(batch_tile), B))
    grid = (B // bt,)

    kernel = functools.partial(_qspa_kernel, batch_tile=bt, seq=L, dim=D)
    out = pl.pallas_call(
        kernel,
        out_shape=jax.ShapeDtypeStruct((B, L, 2 * D), q_real.dtype),
        grid_spec=pltpu.PrefetchScalarGridSpec(
            num_scalar_prefetch=0,
            grid=grid,
            in_specs=[
                pl.BlockSpec((bt, L, 6 * D), lambda i: (i, 0, 0)),
                pl.BlockSpec((6 * D, 6 * D), lambda i: (0, 0)),
                pl.BlockSpec((1, 6 * D), lambda i: (0, 0)),
                pl.BlockSpec((2 * D, 2 * D), lambda i: (0, 0)),
                pl.BlockSpec((1, 2 * D), lambda i: (0, 0)),
            ],
            out_specs=pl.BlockSpec((bt, L, 2 * D), lambda i: (i, 0, 0)),
        ),
        compiler_params=pltpu.CompilerParams(
            dimension_semantics=("parallel",)),
    )(x6, w_qkv_t, b_qkv2, w_out_t, b_out2)

    return out[..., :D], out[..., D:]


def _reference(q_real, q_imag, k_real, k_imag, v_real, v_imag,
               w_qkv, b_qkv, w_out, b_out):
    """Pure-JAX mirror of the PyTorch forward (eval mode; same continuous-phase
    epilogue as the kernel — see the TODO in the kernel)."""
    D = q_real.shape[-1]
    hp = jax.lax.Precision.HIGHEST
    x = jnp.concatenate([q_real, q_imag, k_real, k_imag, v_real, v_imag], axis=-1)
    y = jnp.einsum('ble,fe->blf', x, w_qkv, precision=hp) + b_qkv
    q_r = y[..., 0:D]
    k_r = y[..., 2 * D:3 * D]
    v_r = y[..., 4 * D:5 * D]
    v_i = y[..., 5 * D:6 * D]
    scores = jnp.einsum('bqd,bkd->bqk', q_r, k_r, precision=hp) * (float(D) ** -0.5)
    attn = jax.nn.softmax(scores, axis=-1)
    o_r = jnp.einsum('bqk,bkd->bqd', attn, v_r, precision=hp)
    o_i = jnp.einsum('bqk,bkd->bqd', attn, v_i, precision=hp)
    o = jnp.concatenate([o_r, o_i], axis=-1)
    o = jnp.einsum('blf,gf->blg', o, w_out, precision=hp) + b_out
    out_real, out_imag = o[..., :D], o[..., D:]
    xr = out_real + 1e-8
    yi = out_imag + 1e-8
    rinv = jax.lax.rsqrt(xr * xr + yi * yi + 1e-24)
    pr = out_real * (xr * rinv)
    pi = out_imag * (yi * rinv)
    n = jax.lax.rsqrt(pr * pr + pi * pi + 1e-8)
    return pr * n, pi * n


if __name__ == "__main__":
    B, L, D = 2, 8, 32

    key = jax.random.PRNGKey(0)
    keys = jax.random.split(key, 10)

    q_real, q_imag, k_real, k_imag, v_real, v_imag = (
        jax.random.normal(keys[i], (B, L, D), dtype=jnp.float32) for i in range(6))

    # torch-style inits: xavier_uniform weights, U(+/- 1/sqrt(fan_in)) biases.
    lim_qkv = math.sqrt(6.0 / (6 * D + 6 * D))
    w_qkv = jax.random.uniform(keys[6], (6 * D, 6 * D), jnp.float32, -lim_qkv, lim_qkv)
    b_qkv = jax.random.uniform(keys[7], (6 * D,), jnp.float32,
                               -1.0 / math.sqrt(6 * D), 1.0 / math.sqrt(6 * D))
    lim_out = math.sqrt(6.0 / (2 * D + 2 * D))
    w_out = jax.random.uniform(keys[8], (2 * D, 2 * D), jnp.float32, -lim_out, lim_out)
    b_out = jax.random.uniform(keys[9], (2 * D,), jnp.float32,
                               -1.0 / math.sqrt(2 * D), 1.0 / math.sqrt(2 * D))

    real, imag = quantum_state_preserving_attention(
        q_real, q_imag, k_real, k_imag, v_real, v_imag,
        w_qkv, b_qkv, w_out, b_out, batch_tile=8)
    jax.block_until_ready((real, imag))

    ref_real, ref_imag = _reference(q_real, q_imag, k_real, k_imag, v_real, v_imag,
                                    w_qkv, b_qkv, w_out, b_out)

    assert real.shape == (B, L, D) and imag.shape == (B, L, D)
    # Generous gates: the unit-phase normalization is ill-conditioned where both
    # components are tiny, and MXU f32 emulation can differ from the HIGHEST-
    # precision XLA reference by a few ulps; real bugs give O(1) errors.
    assert float(jnp.mean(jnp.abs(real - ref_real))) < 2e-3
    assert float(jnp.mean(jnp.abs(imag - ref_imag))) < 2e-3
    assert bool(jnp.allclose(real, ref_real, atol=2e-2, rtol=2e-2))
    assert bool(jnp.allclose(imag, ref_imag, atol=2e-2, rtol=2e-2))

    print("KERNEL_OK")
</pallas_src>

<mosaic_0001>
module attributes {stable_mosaic.version = 11 : i64} {
  func.func @_qspa_kernel(%arg0: i32, %arg1: memref<2x8x192xf32, #tpu.memory_space<vmem>>, %arg2: memref<192x192xf32, #tpu.memory_space<vmem>>, %arg3: memref<1x192xf32, #tpu.memory_space<vmem>>, %arg4: memref<64x64xf32, #tpu.memory_space<vmem>>, %arg5: memref<1x64xf32, #tpu.memory_space<vmem>>, %arg6: memref<2x8x64xf32, #tpu.memory_space<vmem>>) attributes {dimension_semantics = [#tpu.dimension_semantics<parallel>], iteration_bounds = array<i64: 1>, scalar_prefetch = 0 : i64, scratch_operands = 0 : i64, tpu.core_type = #tpu.core_type<tc>, window_params = [{transform_indices = @transform_0, window_bounds = array<i64: 2, 8, 192>}, {pipeline_mode = #tpu.pipeline_mode<synchronous>, transform_indices = @transform_1, window_bounds = array<i64: 192, 192>}, {pipeline_mode = #tpu.pipeline_mode<synchronous>, transform_indices = @transform_2, window_bounds = array<i64: 1, 192>}, {pipeline_mode = #tpu.pipeline_mode<synchronous>, transform_indices = @transform_3, window_bounds = array<i64: 64, 64>}, {pipeline_mode = #tpu.pipeline_mode<synchronous>, transform_indices = @transform_4, window_bounds = array<i64: 1, 64>}, {transform_indices = @transform_5, window_bounds = array<i64: 2, 8, 64>}]} {
    %c0 = arith.constant 0 : index
    %c0_0 = arith.constant 0 : index
    %c0_1 = arith.constant 0 : index
    %0 = vector.load %arg1[%c0, %c0_0, %c0_1] : memref<2x8x192xf32, #tpu.memory_space<vmem>>, vector<2x8x192xf32>
    %1 = vector.shape_cast %0 : vector<2x8x192xf32> to vector<16x192xf32>
    %c0_2 = arith.constant 0 : index
    %c0_3 = arith.constant 0 : index
    %2 = vector.load %arg2[%c0_2, %c0_3] : memref<192x192xf32, #tpu.memory_space<vmem>>, vector<192x192xf32>
    %cst = arith.constant dense<0.000000e+00> : vector<16x192xf32>
    %3 = tpu.matmul %1, %2, %cst {dimension_numbers = #tpu.dot_dimension_numbers<[1], [0], [0], [1], [0, 0, 1, 1], [], []>} : vector<16x192xf32>, vector<192x192xf32>, vector<16x192xf32> -> vector<16x192xf32>
    %c0_4 = arith.constant 0 : index
    %c0_5 = arith.constant 0 : index
    %4 = vector.load %arg3[%c0_4, %c0_5] : memref<1x192xf32, #tpu.memory_space<vmem>>, vector<1x192xf32>
    %5 = vector.broadcast %4 : vector<1x192xf32> to vector<16x192xf32>
    %6 = arith.addf %3, %5 : vector<16x192xf32>
    %7 = vector.extract_strided_slice %6 {offsets = [0, 0], sizes = [16, 32], strides = [1, 1]} : vector<16x192xf32> to vector<16x32xf32>
    %8 = vector.shape_cast %7 : vector<16x32xf32> to vector<2x8x32xf32>
    %9 = vector.extract_strided_slice %6 {offsets = [0, 64], sizes = [16, 32], strides = [1, 1]} : vector<16x192xf32> to vector<16x32xf32>
    %10 = vector.shape_cast %9 : vector<16x32xf32> to vector<2x8x32xf32>
    %11 = vector.extract_strided_slice %6 {offsets = [0, 128], sizes = [16, 64], strides = [1, 1]} : vector<16x192xf32> to vector<16x64xf32>
    %12 = vector.shape_cast %11 : vector<16x64xf32> to vector<2x8x64xf32>
    "tpu.trace_start"() <{level = 10 : i32, message = "bqd,bkd->bqk"}> : () -> ()
    %cst_6 = arith.constant dense<0.000000e+00> : vector<2x8x8xf32>
    %13 = tpu.matmul %8, %10, %cst_6 {dimension_numbers = #tpu.dot_dimension_numbers<[2], [2], [1], [1], [0, 0, 0, 1, 1, 1], [0], [0]>} : vector<2x8x32xf32>, vector<2x8x32xf32>, vector<2x8x8xf32> -> vector<2x8x8xf32>
    "tpu.trace_stop"() : () -> ()
    %cst_7 = arith.constant 0.176776692 : f32
    %14 = vector.broadcast %cst_7 : f32 to vector<2x8x8xf32>
    %15 = arith.mulf %13, %14 : vector<2x8x8xf32>
    %cst_8 = arith.constant dense<0xFF800000> : vector<2x8xf32>
    %16 = vector.multi_reduction <maximumf>, %15, %cst_8 [2] : vector<2x8x8xf32> to vector<2x8xf32>
    %17 = vector.shape_cast %16 : vector<2x8xf32> to vector<2x8x1xf32>
    %18 = vector.broadcast %17 : vector<2x8x1xf32> to vector<2x8x8xf32>
    %19 = arith.subf %15, %18 : vector<2x8x8xf32>
    %20 = math.exp %19 : vector<2x8x8xf32>
    %cst_9 = arith.constant dense<0.000000e+00> : vector<2x8xf32>
    %21 = vector.multi_reduction <add>, %20, %cst_9 [2] : vector<2x8x8xf32> to vector<2x8xf32>
    %22 = vector.shape_cast %21 : vector<2x8xf32> to vector<2x8x1xf32>
    %23 = vector.broadcast %22 : vector<2x8x1xf32> to vector<2x8x8xf32>
    %24 = arith.divf %20, %23 : vector<2x8x8xf32>
    "tpu.trace_start"() <{level = 10 : i32, message = "bqk,bkd->bqd"}> : () -> ()
    %cst_10 = arith.constant dense<0.000000e+00> : vector<2x8x64xf32>
    %25 = tpu.matmul %24, %12, %cst_10 {dimension_numbers = #tpu.dot_dimension_numbers<[2], [1], [1], [2], [0, 0, 0, 1, 1, 2], [0], [0]>} : vector<2x8x8xf32>, vector<2x8x64xf32>, vector<2x8x64xf32> -> vector<2x8x64xf32>
    "tpu.trace_stop"() : () -> ()
    %26 = vector.shape_cast %25 : vector<2x8x64xf32> to vector<16x64xf32>
    %c0_11 = arith.constant 0 : index
    %c0_12 = arith.constant 0 : index
    %27 = vector.load %arg4[%c0_11, %c0_12] : memref<64x64xf32, #tpu.memory_space<vmem>>, vector<64x64xf32>
    %cst_13 = arith.constant dense<0.000000e+00> : vector<16x64xf32>
    %28 = tpu.matmul %26, %27, %cst_13 {dimension_numbers = #tpu.dot_dimension_numbers<[1], [0], [0], [1], [0, 0, 1, 1], [], []>} : vector<16x64xf32>, vector<64x64xf32>, vector<16x64xf32> -> vector<16x64xf32>
    %c0_14 = arith.constant 0 : index
    %c0_15 = arith.constant 0 : index
    %29 = vector.load %arg5[%c0_14, %c0_15] : memref<1x64xf32, #tpu.memory_space<vmem>>, vector<1x64xf32>
    %30 = vector.broadcast %29 : vector<1x64xf32> to vector<16x64xf32>
    %31 = arith.addf %28, %30 : vector<16x64xf32>
    %32 = vector.extract_strided_slice %31 {offsets = [0, 0], sizes = [16, 32], strides = [1, 1]} : vector<16x64xf32> to vector<16x32xf32>
    %33 = vector.extract_strided_slice %31 {offsets = [0, 32], sizes = [16, 32], strides = [1, 1]} : vector<16x64xf32> to vector<16x32xf32>
    %cst_16 = arith.constant 9.99999993E-9 : f32
    %34 = vector.broadcast %cst_16 : f32 to vector<16x32xf32>
    %35 = arith.addf %32, %34 : vector<16x32xf32>
    %cst_17 = arith.constant 9.99999993E-9 : f32
    %36 = vector.broadcast %cst_17 : f32 to vector<16x32xf32>
    %37 = arith.addf %33, %36 : vector<16x32xf32>
    %38 = arith.mulf %35, %35 : vector<16x32xf32>
    %39 = arith.mulf %37, %37 : vector<16x32xf32>
    %40 = arith.addf %38, %39 : vector<16x32xf32>
    %cst_18 = arith.constant 1.000000e-24 : f32
    %41 = vector.broadcast %cst_18 : f32 to vector<16x32xf32>
    %42 = arith.addf %40, %41 : vector<16x32xf32>
    %43 = math.rsqrt %42 : vector<16x32xf32>
    %44 = arith.mulf %35, %43 : vector<16x32xf32>
    %45 = arith.mulf %32, %44 : vector<16x32xf32>
    %46 = arith.mulf %37, %43 : vector<16x32xf32>
    %47 = arith.mulf %33, %46 : vector<16x32xf32>
    %48 = arith.mulf %45, %45 : vector<16x32xf32>
    %49 = arith.mulf %47, %47 : vector<16x32xf32>
    %50 = arith.addf %48, %49 : vector<16x32xf32>
    %cst_19 = arith.constant 9.99999993E-9 : f32
    %51 = vector.broadcast %cst_19 : f32 to vector<16x32xf32>
    %52 = arith.addf %50, %51 : vector<16x32xf32>
    %53 = math.rsqrt %52 : vector<16x32xf32>
    %54 = arith.mulf %45, %53 : vector<16x32xf32>
    %55 = arith.mulf %47, %53 : vector<16x32xf32>
    %56 = tpu.concatenate %54, %55 in 1 : vector<16x32xf32>, vector<16x32xf32> -> vector<16x64xf32>
    %57 = vector.shape_cast %56 : vector<16x64xf32> to vector<2x8x64xf32>
    %c0_20 = arith.constant 0 : index
    %c0_21 = arith.constant 0 : index
    %c0_22 = arith.constant 0 : index
    %58 = vector.load %arg6[%c0_20, %c0_21, %c0_22] : memref<2x8x64xf32, #tpu.memory_space<vmem>>, vector<2x8x64xf32>
    tpu.vector_store %arg6[%c0_20, %c0_21, %c0_22], %57 {strides = array<i32>} : memref<2x8x64xf32, #tpu.memory_space<vmem>>, vector<2x8x64xf32>,
    return
  }
  func.func @transform_0(%arg0: i32) -> (i32, i32, i32) {
    %c0_i32 = arith.constant 0 : i32
    %c0_i32_0 = arith.constant 0 : i32
    %c0_i32_1 = arith.constant 0 : i32
    return %arg0, %c0_i32, %c0_i32_0 : i32, i32, i32
  }
  func.func @transform_1(%arg0: i32) -> (i32, i32) {
    %c0_i32 = arith.constant 0 : i32
    %c0_i32_0 = arith.constant 0 : i32
    %c0_i32_1 = arith.constant 0 : i32
    return %c0_i32, %c0_i32_0 : i32, i32
  }
  func.func @transform_2(%arg0: i32) -> (i32, i32) {
    %c0_i32 = arith.constant 0 : i32
    %c0_i32_0 = arith.constant 0 : i32
    %c0_i32_1 = arith.constant 0 : i32
    return %c0_i32, %c0_i32_0 : i32, i32
  }
  func.func @transform_3(%arg0: i32) -> (i32, i32) {
    %c0_i32 = arith.constant 0 : i32
    %c0_i32_0 = arith.constant 0 : i32
    %c0_i32_1 = arith.constant 0 : i32
    return %c0_i32, %c0_i32_0 : i32, i32
  }
  func.func @transform_4(%arg0: i32) -> (i32, i32) {
    %c0_i32 = arith.constant 0 : i32
    %c0_i32_0 = arith.constant 0 : i32
    %c0_i32_1 = arith.constant 0 : i32
    return %c0_i32, %c0_i32_0 : i32, i32
  }
  func.func @transform_5(%arg0: i32) -> (i32, i32, i32) {
    %c0_i32 = arith.constant 0 : i32
    %c0_i32_0 = arith.constant 0 : i32
    %c0_i32_1 = arith.constant 0 : i32
    return %arg0, %c0_i32, %c0_i32_0 : i32, i32, i32
  }
}

</mosaic_0001>

<llo_original>
// kernel: tpu_custom_call.1
$region0: #{tpu_custom_call.1}
  #allocation0 [shape = 'u32[]', space=smem, size = 0x4, offset = 0x4, fixed_abs, tag = 'smem constant byte address 0x4 - core index']
  #allocation1 [shape = 'u32[144,128]{1,0:T(1,128)}', space=vmem, size = 0x12000, scoped, tag = 'internal scratch']
  %s0 = inlined_call_operand.hbm [shape: f32[2,8,192], index: 0, kind: input, shape index: {}]
  %s1 = inlined_call_operand.hbm [shape: f32[192,192], index: 1, kind: input, shape index: {}]
  %s2 = inlined_call_operand.vmem [shape: f32[1,192], index: 2, kind: input, shape index: {}]
  %s3 = inlined_call_operand.hbm [shape: f32[64,64], index: 3, kind: input, shape index: {}]
  %s4 = inlined_call_operand.vmem [shape: f32[1,64], index: 4, kind: input, shape index: {}]
  %s5 = inlined_call_operand.hbm [shape: f32[2,8,64], index: 5, kind: output, shape index: {}]
  %s6 = sld [smem:[#allocation0]]
  $region42: #{tpu_custom_call.1} parent=0
    _
  %s8 = ssub.s32 1, %s6
  %s9 = scalar_select 0, %s8, %s6
  $region1: #{tpu_custom_call.1} parent=0
    #allocation2 [shape = 'u8[16384]{0}', space=vmem, size = 0x4000, scoped, tag = 'input window, operand 0, single buffered']
    #allocation3 [shape = 's32[1]{0}', space=sflag, size = 0x4, scoped, tag = 'scoped memory for tpu_custom_call.1']
    #allocation4 [shape = 's32[1]{0}', space=sflag, size = 0x4, scoped, tag = 'scoped memory for tpu_custom_call.1']
    #allocation5 [shape = 'u8[196608]{0}', space=vmem, size = 0x30000, scoped, tag = 'input window, operand 1, single buffered']
    #allocation6 [shape = 's32[1]{0}', space=sflag, size = 0x4, scoped, tag = 'scoped memory for tpu_custom_call.1']
    #allocation7 [shape = 'u8[32768]{0}', space=vmem, size = 0x8000, scoped, tag = 'input window, operand 3, single buffered']
    #allocation8 [shape = 'u8[8192]{0}', space=vmem, size = 0x2000, scoped, tag = 'output window, operand 0, single buffered']
    %10 = vsyncpa [#allocation3], 0
    %11 = vsyncpa [#allocation6], 0
    %12 = vsyncpa [#allocation4], 0
    // Predicated region
    $region2: #{tpu_custom_call.1} parent=1 // pred_check
      _
    $region3: #{tpu_custom_call.1} parent=1 // pred_check_branch
      %14 = sbr.rel (0) target = $region5
    $region4: #{tpu_custom_call.1} parent=1 // pred_region
      %s16 = ssub.s32 512, 512
      %17 = vsyncadd [#allocation3], %s16
      %s18 = sshll.u32 [#allocation2], 4
      %s19 = int_to_ptr.vmem [resolvable:$true] %s18
      %24 = dma.hbm_to_vmem [thread:$0]  %s0, 512, %s19, [#allocation3], 256, 256, 16
    $region5: #{tpu_custom_call.1} parent=1 // pred_fallthru
      _
    // Predicated region
    $region6: #{tpu_custom_call.1} parent=1 // pred_check
      _
    $region7: #{tpu_custom_call.1} parent=1 // pred_check_branch
      %26 = sbr.rel (0) target = $region9
    $region8: #{tpu_custom_call.1} parent=1 // pred_region
      %s28 = ssub.s32 6144, 6144
      %29 = vsyncadd [#allocation6], %s28
      %s30 = sshll.u32 [#allocation5], 4
      %s31 = int_to_ptr.vmem [resolvable:$true] %s30
      %36 = dma.hbm_to_vmem [thread:$0]  %s1, 6144, %s31, [#allocation6], 256, 256, 16
    $region9: #{tpu_custom_call.1} parent=1 // pred_fallthru
      _
    // Predicated region
    $region10: #{tpu_custom_call.1} parent=1 // pred_check
      _
    $region11: #{tpu_custom_call.1} parent=1 // pred_check_branch
      %38 = sbr.rel (0) target = $region13
    $region12: #{tpu_custom_call.1} parent=1 // pred_region
      _
    $region13: #{tpu_custom_call.1} parent=1 // pred_fallthru
      _
    // Predicated region
    $region14: #{tpu_custom_call.1} parent=1 // pred_check
      _
    $region15: #{tpu_custom_call.1} parent=1 // pred_check_branch
      %40 = sbr.rel (0) target = $region17
    $region16: #{tpu_custom_call.1} parent=1 // pred_region
      %s42 = ssub.s32 1024, 1024
      %43 = vsyncadd [#allocation6], %s42
      %s44 = sshll.u32 [#allocation7], 4
      %s45 = int_to_ptr.vmem [resolvable:$true] %s44
      %50 = dma.hbm_to_vmem [thread:$0]  %s3, 1024, %s45, [#allocation6], 128, 128, 8
    $region17: #{tpu_custom_call.1} parent=1 // pred_fallthru
      _
    // Predicated region
    $region18: #{tpu_custom_call.1} parent=1 // pred_check
      _
    $region19: #{tpu_custom_call.1} parent=1 // pred_check_branch
      %52 = sbr.rel (0) target = $region21
    $region20: #{tpu_custom_call.1} parent=1 // pred_region
      _
    $region21: #{tpu_custom_call.1} parent=1 // pred_fallthru
      _
    // Predicated region
    $region22: #{tpu_custom_call.1} parent=1 // pred_check
      _
    $region23: #{tpu_custom_call.1} parent=1 // pred_check_branch
      %54 = sbr.rel (0) target = $region25
    $region24: #{tpu_custom_call.1} parent=1 // pred_region
      %55 = dma.done [#allocation3], 512
    $region25: #{tpu_custom_call.1} parent=1 // pred_fallthru
      _
    // Predicated region
    $region26: #{tpu_custom_call.1} parent=1 // pred_check
      _
    $region27: #{tpu_custom_call.1} parent=1 // pred_check_branch
      %57 = sbr.rel (0) target = $region29
    $region28: #{tpu_custom_call.1} parent=1 // pred_region
      %58 = dma.done [#allocation6], 6144
    $region29: #{tpu_custom_call.1} parent=1 // pred_fallthru
      _
    // Predicated region
    $region30: #{tpu_custom_call.1} parent=1 // pred_check
      _
    $region31: #{tpu_custom_call.1} parent=1 // pred_check_branch
      %60 = sbr.rel (0) target = $region33
    $region32: #{tpu_custom_call.1} parent=1 // pred_region
      %61 = dma.done [#allocation6], 1024
    $region33: #{tpu_custom_call.1} parent=1 // pred_fallthru
      _
    %v62 = vld [vmem:[#allocation2] sm:$0xff]
    %v63 = vld [vmem:[#allocation2 + $0x8] sm:$0xff]
    %v64 = vld [vmem:[#allocation2 + $0x10] sm:$0xff]
    %v65 = vld [vmem:[#allocation2 + $0x18] sm:$0xff]
    %v66 = vld [vmem:[#allocation5] sm:$0xff]
    %v67 = vld [vmem:[#allocation5 + $0x8] sm:$0xff]
    %v68 = vld [vmem:[#allocation5 + $0x10] sm:$0xff]
    %v69 = vld [vmem:[#allocation5 + $0x18] sm:$0xff]
    %v70 = vld [vmem:[#allocation5 + $0x20] sm:$0xff]
    %v71 = vld [vmem:[#allocation5 + $0x28] sm:$0xff]
    %v72 = vld [vmem:[#allocation5 + $0x30] sm:$0xff]
    %v73 = vld [vmem:[#allocation5 + $0x38] sm:$0xff]
    %v74 = vld [vmem:[#allocation5 + $0x40] sm:$0xff]
    %v75 = vld [vmem:[#allocation5 + $0x48] sm:$0xff]
    %v76 = vld [vmem:[#allocation5 + $0x50] sm:$0xff]
    %v77 = vld [vmem:[#allocation5 + $0x58] sm:$0xff]
    %v78 = vld [vmem:[#allocation5 + $0x60] sm:$0xff]
    %v79 = vld [vmem:[#allocation5 + $0x68] sm:$0xff]
    %v80 = vld [vmem:[#allocation5 + $0x70] sm:$0xff]
    %v81 = vld [vmem:[#allocation5 + $0x78] sm:$0xff]
    %v82 = vld [vmem:[#allocation5 + $0x80] sm:$0xff]
    %v83 = vld [vmem:[#allocation5 + $0x88] sm:$0xff]
    %v84 = vld [vmem:[#allocation5 + $0x90] sm:$0xff]
    %v85 = vld [vmem:[#allocation5 + $0x98] sm:$0xff]
    %v86 = vld [vmem:[#allocation5 + $0xa0] sm:$0xff]
    %v87 = vld [vmem:[#allocation5 + $0xa8] sm:$0xff]
    %v88 = vld [vmem:[#allocation5 + $0xb0] sm:$0xff]
    %v89 = vld [vmem:[#allocation5 + $0xb8] sm:$0xff]
    %v90 = vld [vmem:[#allocation5 + $0xc0] sm:$0xff]
    %v91 = vld [vmem:[#allocation5 + $0xc8] sm:$0xff]
    %v92 = vld [vmem:[#allocation5 + $0xd0] sm:$0xff]
    %v93 = vld [vmem:[#allocation5 + $0xd8] sm:$0xff]
    %v94 = vld [vmem:[#allocation5 + $0xe0] sm:$0xff]
    %v95 = vld [vmem:[#allocation5 + $0xe8] sm:$0xff]
    %v96 = vld [vmem:[#allocation5 + $0xf0] sm:$0xff]
    %v97 = vld [vmem:[#allocation5 + $0xf8] sm:$0xff]
    %v98 = vld [vmem:[#allocation5 + $0x100] sm:$0xff]
    %v99 = vld [vmem:[#allocation5 + $0x108] sm:$0xff]
    %v100 = vld [vmem:[#allocation5 + $0x110] sm:$0xff]
    %v101 = vld [vmem:[#allocation5 + $0x118] sm:$0xff]
    %v102 = vld [vmem:[#allocation5 + $0x120] sm:$0xff]
    %v103 = vld [vmem:[#allocation5 + $0x128] sm:$0xff]
    %v104 = vld [vmem:[#allocation5 + $0x130] sm:$0xff]
    %v105 = vld [vmem:[#allocation5 + $0x138] sm:$0xff]
    %v106 = vld [vmem:[#allocation5 + $0x140] sm:$0xff]
    %v107 = vld [vmem:[#allocation5 + $0x148] sm:$0xff]
    %v108 = vld [vmem:[#allocation5 + $0x150] sm:$0xff]
    %v109 = vld [vmem:[#allocation5 + $0x158] sm:$0xff]
    %v110 = vld [vmem:[#allocation5 + $0x160] sm:$0xff]
    %v111 = vld [vmem:[#allocation5 + $0x168] sm:$0xff]
    %v112 = vld [vmem:[#allocation5 + $0x170] sm:$0xff]
    %v113 = vld [vmem:[#allocation5 + $0x178] sm:$0xff]
    %v114 = vld [vmem:[%s2] sm:$0x3]
    %v116 = vlaneseq
    %v117 = vshrl.u32 %v116, 7
    %v118 = vsub.s32 0, %v117
    %v119 = vrot.slane %v114, %v118
    %v120 = vlaneseq
    %v121 = vshrl.u32 %v120, 7
    %v122 = vsub.s32 1, %v121
    %v123 = vrot.slane %v114, %v122
    %vm126 = vcmask 523264
    %v128 = vsel %vm126, %v63, 0
    %v131 = vsel %vm126, %v65, 0
    %133 = vmatprep.subr.mxu0 %v67
    %134 = vmatpush1.msra.mxu0 %v66
    %135 = vmatprep.subr.mxu0 %v69
    %136 = vmatpush1.msra.mxu0 %v68
    %137 = vmatprep.subr.mxu0 %v71
    %138 = vmatpush1.msra.mxu0 %v70
    %139 = vmatprep.subr.mxu0 %v73
    %140 = vmatpush1.msra.mxu0 %v72
    %141 = vmatprep.subr.mxu0 %v75
    %142 = vmatpush1.msra.mxu0 %v74
    %143 = vmatprep.subr.mxu0 %v77
    %144 = vmatpush1.msra.mxu0 %v76
    %145 = vmatprep.subr.mxu0 %v79
    %146 = vmatpush1.msra.mxu0 %v78
    %147 = vmatprep.subr.mxu0 %v81
    %148 = vmatpush1.msra.mxu0 %v80
    %149 = vmatprep.subr.mxu0 %v83
    %150 = vmatpush1.msra.mxu0 %v82
    %151 = vmatprep.subr.mxu0 %v85
    %152 = vmatpush1.msra.mxu0 %v84
    %153 = vmatprep.subr.mxu0 %v87
    %154 = vmatpush1.msra.mxu0 %v86
    %155 = vmatprep.subr.mxu0 %v89
    %156 = vmatpush1.msra.mxu0 %v88
    %157 = vmatprep.subr.mxu0 %v91
    %158 = vmatpush1.msra.mxu0 %v90
    %159 = vmatprep.subr.mxu0 %v93
    %160 = vmatpush1.msra.mxu0 %v92
    %161 = vmatprep.subr.mxu0 %v95
    %162 = vmatpush1.msra.mxu0 %v94
    %163 = vmatprep.subr.mxu0 %v97
    %164 = vmatpush1.msra.mxu0 %v96
    %165 = vmatprep.subr.mxu0 %v99
    %166 = vmatpush1.msra.mxu0 %v98
    %167 = vmatprep.subr.mxu0 %v101
    %168 = vmatpush1.msra.mxu0 %v100
    %169 = vmatprep.subr.mxu0 %v103
    %170 = vmatpush1.msra.mxu0 %v102
    %171 = vmatprep.subr.mxu0 %v105
    %172 = vmatpush1.msra.mxu0 %v104
    %173 = vmatprep.subr.mxu0 %v107
    %174 = vmatpush1.msra.mxu0 %v106
    %175 = vmatprep.subr.mxu0 %v109
    %176 = vmatpush1.msra.mxu0 %v108
    %177 = vmatprep.subr.mxu0 %v111
    %178 = vmatpush1.msra.mxu0 %v110
    %179 = vmatprep.subr.mxu0 %v113
    %180 = vmatpush1.msra.mxu0 %v112
    %181 = vmatprep.subr.mxu0 0.0
    %182 = vmatpush1.msra.mxu0 0.0
    %183 = vmatprep.subr.mxu0 0.0
    %184 = vmatpush1.msra.mxu0 0.0
    %185 = vmatprep.subr.mxu0 0.0
    %186 = vmatpush1.msra.mxu0 0.0
    %187 = vmatprep.subr.mxu0 0.0
    %188 = vmatpush1.msra.mxu0 0.0
    %189 = vmatprep.subr.mxu0 0.0
    %190 = vmatpush1.msra.mxu0 0.0
    %191 = vmatprep.subr.mxu0 0.0
    %192 = vmatpush1.msra.mxu0 0.0
    %193 = vmatprep.subr.mxu0 0.0
    %194 = vmatpush1.msra.mxu0 0.0
    %195 = vmatprep.subr.mxu0 0.0
    %196 = vmatpush1.msra.mxu0 0.0
    %197 = vmatprep.mubr.f32.mxu0 %v128
    %198 = vmatmul.mubr.f32.gmra.mrb[0].mxu0 %v62
    %v199 = vpop.f32.mrb[0].mxu0
    %v200 = vadd.f32 %v119, %v199
    %v201 = vpop.f32.mrb[0].mxu0
    %v202 = vadd.f32 %v123, %v201
    %203 = vmatprep.mubr.f32.mxu0 %v131
    %204 = vmatmul.mubr.f32.gmra.mrb[0].mxu0 %v64
    %v205 = vpop.f32.mrb[0].mxu0
    %v206 = vadd.f32 %v119, %v205
    %v207 = vpop.f32.mrb[0].mxu0
    %v208 = vadd.f32 %v123, %v207
    %209 = vdwg.mxu0
    %211 = vrot.lane.b32.xlu0 %v200, 64
    %v212 = vpop.permute.xlu0 %211
    %vm213 = vcmask 261120
    %v214 = vsel %vm213, %v200, 0
    %v216 = vsel %vm213, %v212, 0
    %218 = vmatprep.subr.mxu0 0.0
    %219 = vmatpush1.xpose.msra.mxu0 %v216
    %220 = vmatprep.subr.mxu0 0.0
    %221 = vmatpush1.xpose.msra.mxu0 0.0
    %222 = vmatprep.subr.mxu0 0.0
    %223 = vmatpush1.xpose.msra.mxu0 0.0
    %224 = vmatprep.subr.mxu0 0.0
    %225 = vmatpush1.xpose.msra.mxu0 0.0
    %226 = vmatprep.subr.mxu0 0.0
    %227 = vmatpush1.xpose.msra.mxu0 0.0
    %228 = vmatprep.subr.mxu0 0.0
    %229 = vmatpush1.xpose.msra.mxu0 0.0
    %230 = vmatprep.subr.mxu0 0.0
    %231 = vmatpush1.xpose.msra.mxu0 0.0
    %232 = vmatprep.subr.mxu0 0.0
    %233 = vmatpush1.xpose.msra.mxu0 0.0
    %234 = vmatprep.subr.mxu0 0.0
    %235 = vmatpush1.xpose.msra.mxu0 0.0
    %236 = vmatprep.subr.mxu0 0.0
    %237 = vmatpush1.xpose.msra.mxu0 0.0
    %238 = vmatprep.subr.mxu0 0.0
    %239 = vmatpush1.xpose.msra.mxu0 0.0
    %240 = vmatprep.subr.mxu0 0.0
    %241 = vmatpush1.xpose.msra.mxu0 0.0
    %242 = vmatprep.subr.mxu0 0.0
    %243 = vmatpush1.xpose.msra.mxu0 0.0
    %244 = vmatprep.subr.mxu0 0.0
    %245 = vmatpush1.xpose.msra.mxu0 0.0
    %246 = vmatprep.subr.mxu0 0.0
    %247 = vmatpush1.xpose.msra.mxu0 0.0
    %248 = vmatprep.subr.mxu0 0.0
    %249 = vmatpush1.xpose.msra.mxu0 0.0
    %250 = vmatprep.subr.mxu0 0.0
    %251 = vmatpush1.xpose.msra.mxu0 0.0
    %252 = vmatprep.subr.mxu0 0.0
    %253 = vmatpush1.xpose.msra.mxu0 0.0
    %254 = vmatprep.subr.mxu0 0.0
    %255 = vmatpush1.xpose.msra.mxu0 0.0
    %256 = vmatprep.subr.mxu0 0.0
    %257 = vmatpush1.xpose.msra.mxu0 0.0
    %258 = vmatprep.subr.mxu0 0.0
    %259 = vmatpush1.xpose.msra.mxu0 0.0
    %260 = vmatprep.subr.mxu0 0.0
    %261 = vmatpush1.xpose.msra.mxu0 0.0
    %262 = vmatprep.subr.mxu0 0.0
    %263 = vmatpush1.xpose.msra.mxu0 0.0
    %264 = vmatprep.subr.mxu0 0.0
    %265 = vmatpush1.xpose.msra.mxu0 0.0
    %266 = vmatprep.subr.mxu0 0.0
    %267 = vmatpush1.xpose.msra.mxu0 0.0
    %268 = vmatprep.subr.mxu0 0.0
    %269 = vmatpush1.xpose.msra.mxu0 0.0
    %270 = vmatprep.subr.mxu0 0.0
    %271 = vmatpush1.xpose.msra.mxu0 0.0
    %272 = vmatprep.subr.mxu0 0.0
    %273 = vmatpush1.xpose.msra.mxu0 0.0
    %274 = vmatprep.subr.mxu0 0.0
    %275 = vmatpush1.xpose.msra.mxu0 0.0
    %276 = vmatprep.subr.mxu0 0.0
    %277 = vmatpush1.xpose.msra.mxu0 0.0
    %278 = vmatprep.subr.mxu0 0.0
    %279 = vmatpush1.xpose.msra.mxu0 0.0
    %280 = vmatprep.subr.mxu0 0.0
    %281 = vmatpush1.xpose.msra.mxu0 0.0
    %282 = vmatprep.mubr.f32.mxu0 0.0
    %283 = vmatmul.mubr.f32.gmra.mrb[0].mxu0 %v214
    %v284 = vpop.f32.mrb[0].mxu0
    %v285 = vadd.f32 0.0, %v284
    %v286 = vpop.f32.mrb[0].mxu0
    %287 = vdwg.mxu0
    %289 = vrot.lane.b32.xlu0 %v206, 64
    %v290 = vpop.permute.xlu0 %289
    %v291 = vsel %vm213, %v206, 0
    %v293 = vsel %vm213, %v290, 0
    %295 = vmatprep.subr.mxu0 0.0
    %296 = vmatpush1.xpose.msra.mxu0 %v293
    %297 = vmatprep.subr.mxu0 0.0
    %298 = vmatpush1.xpose.msra.mxu0 0.0
    %299 = vmatprep.subr.mxu0 0.0
    %300 = vmatpush1.xpose.msra.mxu0 0.0
    %301 = vmatprep.subr.mxu0 0.0
    %302 = vmatpush1.xpose.msra.mxu0 0.0
    %303 = vmatprep.subr.mxu0 0.0
    %304 = vmatpush1.xpose.msra.mxu0 0.0
    %305 = vmatprep.subr.mxu0 0.0
    %306 = vmatpush1.xpose.msra.mxu0 0.0
    %307 = vmatprep.subr.mxu0 0.0
    %308 = vmatpush1.xpose.msra.mxu0 0.0
    %309 = vmatprep.subr.mxu0 0.0
    %310 = vmatpush1.xpose.msra.mxu0 0.0
    %311 = vmatprep.subr.mxu0 0.0
    %312 = vmatpush1.xpose.msra.mxu0 0.0
    %313 = vmatprep.subr.mxu0 0.0
    %314 = vmatpush1.xpose.msra.mxu0 0.0
    %315 = vmatprep.subr.mxu0 0.0
    %316 = vmatpush1.xpose.msra.mxu0 0.0
    %317 = vmatprep.subr.mxu0 0.0
    %318 = vmatpush1.xpose.msra.mxu0 0.0
    %319 = vmatprep.subr.mxu0 0.0
    %320 = vmatpush1.xpose.msra.mxu0 0.0
    %321 = vmatprep.subr.mxu0 0.0
    %322 = vmatpush1.xpose.msra.mxu0 0.0
    %323 = vmatprep.subr.mxu0 0.0
    %324 = vmatpush1.xpose.msra.mxu0 0.0
    %325 = vmatprep.subr.mxu0 0.0
    %326 = vmatpush1.xpose.msra.mxu0 0.0
    %327 = vmatprep.subr.mxu0 0.0
    %328 = vmatpush1.xpose.msra.mxu0 0.0
    %329 = vmatprep.subr.mxu0 0.0
    %330 = vmatpush1.xpose.msra.mxu0 0.0
    %331 = vmatprep.subr.mxu0 0.0
    %332 = vmatpush1.xpose.msra.mxu0 0.0
    %333 = vmatprep.subr.mxu0 0.0
    %334 = vmatpush1.xpose.msra.mxu0 0.0
    %335 = vmatprep.subr.mxu0 0.0
    %336 = vmatpush1.xpose.msra.mxu0 0.0
    %337 = vmatprep.subr.mxu0 0.0
    %338 = vmatpush1.xpose.msra.mxu0 0.0
    %339 = vmatprep.subr.mxu0 0.0
    %340 = vmatpush1.xpose.msra.mxu0 0.0
    %341 = vmatprep.subr.mxu0 0.0
    %342 = vmatpush1.xpose.msra.mxu0 0.0
    %343 = vmatprep.subr.mxu0 0.0
    %344 = vmatpush1.xpose.msra.mxu0 0.0
    %345 = vmatprep.subr.mxu0 0.0
    %346 = vmatpush1.xpose.msra.mxu0 0.0
    %347 = vmatprep.subr.mxu0 0.0
    %348 = vmatpush1.xpose.msra.mxu0 0.0
    %349 = vmatprep.subr.mxu0 0.0
    %350 = vmatpush1.xpose.msra.mxu0 0.0
    %351 = vmatprep.subr.mxu0 0.0
    %352 = vmatpush1.xpose.msra.mxu0 0.0
    %353 = vmatprep.subr.mxu0 0.0
    %354 = vmatpush1.xpose.msra.mxu0 0.0
    %355 = vmatprep.subr.mxu0 0.0
    %356 = vmatpush1.xpose.msra.mxu0 0.0
    %357 = vmatprep.subr.mxu0 0.0
    %358 = vmatpush1.xpose.msra.mxu0 0.0
    %359 = vmatprep.mubr.f32.mxu0 0.0
    %360 = vmatmul.mubr.f32.gmra.mrb[0].mxu0 %v291
    %v361 = vpop.f32.mrb[0].mxu0
    %v362 = vadd.f32 0.0, %v361
    %v363 = vpop.f32.mrb[0].mxu0
    %364 = vdwg.mxu0
    %v365 = vmul.f32 %v285, 0.17677669
    %v366 = vmul.f32 %v362, 0.17677669
    %vm367 = vcmask 64512
    %v368 = vsel %vm367, %v365, -inf
    %369 = vmax.xlane.f32.xlu0 %v368
    %v370 = vpop.xlane.xlu0 %369
    %v371 = vsel %vm367, %v366, -inf
    %372 = vmax.xlane.f32.xlu0 %v371
    %v373 = vpop.xlane.xlu0 %372
    %v374 = vsub.f32 %v365, %v370
    %v375 = vsub.f32 %v366, %v373
    %v376 = vmul.f32 %v374, 1.442695
    %v377 = vpow.pop %v376
    %v378 = vmul.f32 %v375, 1.442695
    %v379 = vpow.pop %v378
    %v380 = vsel %vm367, %v377, 0.0
    %381 = vadd.xlane.f32.xlu0 %v380
    %v382 = vpop.xlane.xlu0 %381
    %v383 = vsel %vm367, %v379, 0.0
    %384 = vadd.xlane.f32.xlu0 %v383
    %v385 = vpop.xlane.xlu0 %384
    %v386 = vrcp.pop %v382
    %v387 = vmul.f32 %v377, %v386
    %v388 = vrcp.pop %v385
    %v389 = vmul.f32 %v379, %v388
    %v391 = vsel %vm367, %v387, 0
    %393 = vmatprep.subr.mxu0 0.0
    %394 = vmatpush1.msra.mxu0 %v202
    %395 = vmatprep.subr.mxu0 0.0
    %396 = vmatpush1.msra.mxu0 0.0
    %397 = vmatprep.subr.mxu0 0.0
    %398 = vmatpush1.msra.mxu0 0.0
    %399 = vmatprep.subr.mxu0 0.0
    %400 = vmatpush1.msra.mxu0 0.0
    %401 = vmatprep.subr.mxu0 0.0
    %402 = vmatpush1.msra.mxu0 0.0
    %403 = vmatprep.subr.mxu0 0.0
    %404 = vmatpush1.msra.mxu0 0.0
    %405 = vmatprep.subr.mxu0 0.0
    %406 = vmatpush1.msra.mxu0 0.0
    %407 = vmatprep.subr.mxu0 0.0
    %408 = vmatpush1.msra.mxu0 0.0
    %409 = vmatprep.subr.mxu0 0.0
    %410 = vmatpush1.msra.mxu0 0.0
    %411 = vmatprep.subr.mxu0 0.0
    %412 = vmatpush1.msra.mxu0 0.0
    %413 = vmatprep.subr.mxu0 0.0
    %414 = vmatpush1.msra.mxu0 0.0
    %415 = vmatprep.subr.mxu0 0.0
    %416 = vmatpush1.msra.mxu0 0.0
    %417 = vmatprep.subr.mxu0 0.0
    %418 = vmatpush1.msra.mxu0 0.0
    %419 = vmatprep.subr.mxu0 0.0
    %420 = vmatpush1.msra.mxu0 0.0
    %421 = vmatprep.subr.mxu0 0.0
    %422 = vmatpush1.msra.mxu0 0.0
    %423 = vmatprep.subr.mxu0 0.0
    %424 = vmatpush1.msra.mxu0 0.0
    %425 = vmatprep.subr.mxu0 0.0
    %426 = vmatpush1.msra.mxu0 0.0
    %427 = vmatprep.subr.mxu0 0.0
    %428 = vmatpush1.msra.mxu0 0.0
    %429 = vmatprep.subr.mxu0 0.0
    %430 = vmatpush1.msra.mxu0 0.0
    %431 = vmatprep.subr.mxu0 0.0
    %432 = vmatpush1.msra.mxu0 0.0
    %433 = vmatprep.subr.mxu0 0.0
    %434 = vmatpush1.msra.mxu0 0.0
    %435 = vmatprep.subr.mxu0 0.0
    %436 = vmatpush1.msra.mxu0 0.0
    %437 = vmatprep.subr.mxu0 0.0
    %438 = vmatpush1.msra.mxu0 0.0
    %439 = vmatprep.subr.mxu0 0.0
    %440 = vmatpush1.msra.mxu0 0.0
    %441 = vmatprep.subr.mxu0 0.0
    %442 = vmatpush1.msra.mxu0 0.0
    %443 = vmatprep.subr.mxu0 0.0
    %444 = vmatpush1.msra.mxu0 0.0
    %445 = vmatprep.subr.mxu0 0.0
    %446 = vmatpush1.msra.mxu0 0.0
    %447 = vmatprep.subr.mxu0 0.0
    %448 = vmatpush1.msra.mxu0 0.0
    %449 = vmatprep.subr.mxu0 0.0
    %450 = vmatpush1.msra.mxu0 0.0
    %451 = vmatprep.subr.mxu0 0.0
    %452 = vmatpush1.msra.mxu0 0.0
    %453 = vmatprep.subr.mxu0 0.0
    %454 = vmatpush1.msra.mxu0 0.0
    %455 = vmatprep.subr.mxu0 0.0
    %456 = vmatpush1.msra.mxu0 0.0
    %457 = vmatprep.mubr.f32.mxu0 0.0
    %458 = vmatmul.mubr.f32.gmra.mrb[0].mxu0 %v391
    %v459 = vpop.f32.mrb[0].mxu0
    %v460 = vadd.f32 0.0, %v459
    %v461 = vpop.f32.mrb[0].mxu0
    %462 = vdwg.mxu0
    %v464 = vsel %vm367, %v389, 0
    %466 = vmatprep.subr.mxu0 0.0
    %467 = vmatpush1.msra.mxu0 %v208
    %468 = vmatprep.subr.mxu0 0.0
    %469 = vmatpush1.msra.mxu0 0.0
    %470 = vmatprep.subr.mxu0 0.0
    %471 = vmatpush1.msra.mxu0 0.0
    %472 = vmatprep.subr.mxu0 0.0
    %473 = vmatpush1.msra.mxu0 0.0
    %474 = vmatprep.subr.mxu0 0.0
    %475 = vmatpush1.msra.mxu0 0.0
    %476 = vmatprep.subr.mxu0 0.0
    %477 = vmatpush1.msra.mxu0 0.0
    %478 = vmatprep.subr.mxu0 0.0
    %479 = vmatpush1.msra.mxu0 0.0
    %480 = vmatprep.subr.mxu0 0.0
    %481 = vmatpush1.msra.mxu0 0.0
    %482 = vmatprep.subr.mxu0 0.0
    %483 = vmatpush1.msra.mxu0 0.0
    %484 = vmatprep.subr.mxu0 0.0
    %485 = vmatpush1.msra.mxu0 0.0
    %486 = vmatprep.subr.mxu0 0.0
    %487 = vmatpush1.msra.mxu0 0.0
    %488 = vmatprep.subr.mxu0 0.0
    %489 = vmatpush1.msra.mxu0 0.0
    %490 = vmatprep.subr.mxu0 0.0
    %491 = vmatpush1.msra.mxu0 0.0
    %492 = vmatprep.subr.mxu0 0.0
    %493 = vmatpush1.msra.mxu0 0.0
    %494 = vmatprep.subr.mxu0 0.0
    %495 = vmatpush1.msra.mxu0 0.0
    %496 = vmatprep.subr.mxu0 0.0
    %497 = vmatpush1.msra.mxu0 0.0
    %498 = vmatprep.subr.mxu0 0.0
    %499 = vmatpush1.msra.mxu0 0.0
    %500 = vmatprep.subr.mxu0 0.0
    %501 = vmatpush1.msra.mxu0 0.0
    %502 = vmatprep.subr.mxu0 0.0
    %503 = vmatpush1.msra.mxu0 0.0
    %504 = vmatprep.subr.mxu0 0.0
    %505 = vmatpush1.msra.mxu0 0.0
    %506 = vmatprep.subr.mxu0 0.0
    %507 = vmatpush1.msra.mxu0 0.0
    %508 = vmatprep.subr.mxu0 0.0
    %509 = vmatpush1.msra.mxu0 0.0
    %510 = vmatprep.subr.mxu0 0.0
    %511 = vmatpush1.msra.mxu0 0.0
    %512 = vmatprep.subr.mxu0 0.0
    %513 = vmatpush1.msra.mxu0 0.0
    %514 = vmatprep.subr.mxu0 0.0
    %515 = vmatpush1.msra.mxu0 0.0
    %516 = vmatprep.subr.mxu0 0.0
    %517 = vmatpush1.msra.mxu0 0.0
    %518 = vmatprep.subr.mxu0 0.0
    %519 = vmatpush1.msra.mxu0 0.0
    %520 = vmatprep.subr.mxu0 0.0
    %521 = vmatpush1.msra.mxu0 0.0
    %522 = vmatprep.subr.mxu0 0.0
    %523 = vmatpush1.msra.mxu0 0.0
    %524 = vmatprep.subr.mxu0 0.0
    %525 = vmatpush1.msra.mxu0 0.0
    %526 = vmatprep.subr.mxu0 0.0
    %527 = vmatpush1.msra.mxu0 0.0
    %528 = vmatprep.subr.mxu0 0.0
    %529 = vmatpush1.msra.mxu0 0.0
    %530 = vmatprep.mubr.f32.mxu0 0.0
    %531 = vmatmul.mubr.f32.gmra.mrb[0].mxu0 %v464
    %v532 = vpop.f32.mrb[0].mxu0
    %v533 = vadd.f32 0.0, %v532
    %v534 = vpop.f32.mrb[0].mxu0
    %535 = vdwg.mxu0
    %v536 = vld [vmem:[#allocation7] sm:$0xff]
    %v537 = vld [vmem:[#allocation7 + $0x8] sm:$0xff]
    %v538 = vld [vmem:[#allocation7 + $0x10] sm:$0xff]
    %v539 = vld [vmem:[#allocation7 + $0x18] sm:$0xff]
    %v540 = vld [vmem:[#allocation7 + $0x20] sm:$0xff]
    %v541 = vld [vmem:[#allocation7 + $0x28] sm:$0xff]
    %v542 = vld [vmem:[#allocation7 + $0x30] sm:$0xff]
    %v543 = vld [vmem:[#allocation7 + $0x38] sm:$0xff]
    %v544 = vld [vmem:[%s4] sm:$0x1]
    %v546 = vlaneseq
    %v547 = vshrl.u32 %v546, 7
    %v548 = vsub.s32 0, %v547
    %v549 = vrot.slane %v544, %v548
    %v552 = vsel %vm126, %v460, 0
    %v555 = vsel %vm126, %v533, 0
    %557 = vmatprep.subr.mxu0 0.0
    %558 = vmatpush1.msra.mxu0 %v536
    %559 = vmatprep.subr.mxu0 0.0
    %560 = vmatpush1.msra.mxu0 %v537
    %561 = vmatprep.subr.mxu0 0.0
    %562 = vmatpush1.msra.mxu0 %v538
    %563 = vmatprep.subr.mxu0 0.0
    %564 = vmatpush1.msra.mxu0 %v539
    %565 = vmatprep.subr.mxu0 0.0
    %566 = vmatpush1.msra.mxu0 %v540
    %567 = vmatprep.subr.mxu0 0.0
    %568 = vmatpush1.msra.mxu0 %v541
    %569 = vmatprep.subr.mxu0 0.0
    %570 = vmatpush1.msra.mxu0 %v542
    %571 = vmatprep.subr.mxu0 0.0
    %572 = vmatpush1.msra.mxu0 %v543
    %573 = vmatprep.subr.mxu0 0.0
    %574 = vmatpush1.msra.mxu0 0.0
    %575 = vmatprep.subr.mxu0 0.0
    %576 = vmatpush1.msra.mxu0 0.0
    %577 = vmatprep.subr.mxu0 0.0
    %578 = vmatpush1.msra.mxu0 0.0
    %579 = vmatprep.subr.mxu0 0.0
    %580 = vmatpush1.msra.mxu0 0.0
    %581 = vmatprep.subr.mxu0 0.0
    %582 = vmatpush1.msra.mxu0 0.0
    %583 = vmatprep.subr.mxu0 0.0
    %584 = vmatpush1.msra.mxu0 0.0
    %585 = vmatprep.subr.mxu0 0.0
    %586 = vmatpush1.msra.mxu0 0.0
    %587 = vmatprep.subr.mxu0 0.0
    %588 = vmatpush1.msra.mxu0 0.0
    %589 = vmatprep.subr.mxu0 0.0
    %590 = vmatpush1.msra.mxu0 0.0
    %591 = vmatprep.subr.mxu0 0.0
    %592 = vmatpush1.msra.mxu0 0.0
    %593 = vmatprep.subr.mxu0 0.0
    %594 = vmatpush1.msra.mxu0 0.0
    %595 = vmatprep.subr.mxu0 0.0
    %596 = vmatpush1.msra.mxu0 0.0
    %597 = vmatprep.subr.mxu0 0.0
    %598 = vmatpush1.msra.mxu0 0.0
    %599 = vmatprep.subr.mxu0 0.0
    %600 = vmatpush1.msra.mxu0 0.0
    %601 = vmatprep.subr.mxu0 0.0
    %602 = vmatpush1.msra.mxu0 0.0
    %603 = vmatprep.subr.mxu0 0.0
    %604 = vmatpush1.msra.mxu0 0.0
    %605 = vmatprep.subr.mxu0 0.0
    %606 = vmatpush1.msra.mxu0 0.0
    %607 = vmatprep.subr.mxu0 0.0
    %608 = vmatpush1.msra.mxu0 0.0
    %609 = vmatprep.subr.mxu0 0.0
    %610 = vmatpush1.msra.mxu0 0.0
    %611 = vmatprep.subr.mxu0 0.0
    %612 = vmatpush1.msra.mxu0 0.0
    %613 = vmatprep.subr.mxu0 0.0
    %614 = vmatpush1.msra.mxu0 0.0
    %615 = vmatprep.subr.mxu0 0.0
    %616 = vmatpush1.msra.mxu0 0.0
    %617 = vmatprep.subr.mxu0 0.0
    %618 = vmatpush1.msra.mxu0 0.0
    %619 = vmatprep.subr.mxu0 0.0
    %620 = vmatpush1.msra.mxu0 0.0
    %621 = vmatprep.mubr.f32.mxu0 0.0
    %622 = vmatmul.mubr.f32.gmra.mrb[0].mxu0 %v552
    %v623 = vpop.f32.mrb[0].mxu0
    %v624 = vadd.f32 %v549, %v623
    %v625 = vpop.f32.mrb[0].mxu0
    %626 = vmatprep.mubr.f32.mxu0 0.0
    %627 = vmatmul.mubr.f32.gmra.mrb[0].mxu0 %v555
    %v628 = vpop.f32.mrb[0].mxu0
    %v629 = vadd.f32 %v549, %v628
    %v630 = vpop.f32.mrb[0].mxu0
    %631 = vdwg.mxu0
    %v632 = vadd.f32 %v624, 1e-08
    %v633 = vadd.f32 %v629, 1e-08
    %v634 = vmul.f32 %v632, %v632
    %v635 = vmul.f32 %v633, %v633
    %638 = vrot.lane.b32.xlu0 %v634, 96
    %v639 = vpop.permute.xlu0 %638
    %640 = vrot.lane.b32.xlu0 %v635, 96
    %v641 = vpop.permute.xlu0 %640
    %v644 = vadd.f32 %v634, %v639
    %v645 = vadd.f32 %v635, %v641
    %v646 = vadd.f32 %v644, 1e-24
    %v647 = vadd.f32 %v645, 1e-24
    %v648 = vrsqrt.pop %v646
    %v649 = vrsqrt.pop %v647
    %v650 = vmul.f32 %v632, %v648
    %v651 = vmul.f32 %v633, %v649
    %v652 = vmul.f32 %v624, %v650
    %v653 = vmul.f32 %v629, %v651
    %656 = vrot.lane.b32.xlu0 %v648, 32
    %v657 = vpop.permute.xlu0 %656
    %658 = vrot.lane.b32.xlu0 %v649, 32
    %v659 = vpop.permute.xlu0 %658
    %v662 = vmul.f32 %v632, %v657
    %v663 = vmul.f32 %v633, %v659
    %v664 = vmul.f32 %v624, %v662
    %v665 = vmul.f32 %v629, %v663
    %v666 = vmul.f32 %v652, %v652
    %v667 = vmul.f32 %v653, %v653
    %v668 = vmul.f32 %v664, %v664
    %v669 = vmul.f32 %v665, %v665
    %672 = vrot.lane.b32.xlu0 %v668, 96
    %v673 = vpop.permute.xlu0 %672
    %674 = vrot.lane.b32.xlu0 %v669, 96
    %v675 = vpop.permute.xlu0 %674
    %v678 = vadd.f32 %v666, %v673
    %v679 = vadd.f32 %v667, %v675
    %v680 = vadd.f32 %v678, 1e-08
    %v681 = vadd.f32 %v679, 1e-08
    %v682 = vrsqrt.pop %v680
    %v683 = vrsqrt.pop %v681
    %v684 = vmul.f32 %v652, %v682
    %v685 = vmul.f32 %v653, %v683
    %688 = vrot.lane.b32.xlu0 %v682, 32
    %v689 = vpop.permute.xlu0 %688
    %690 = vrot.lane.b32.xlu0 %v683, 32
    %v691 = vpop.permute.xlu0 %690
    %v694 = vmul.f32 %v664, %v689
    %v695 = vmul.f32 %v665, %v691
    %v696 = vsel %vm213, %v684, %v694
    %v697 = vsel %vm213, %v685, %v695
    %698 = vst.msk [vmem:[#allocation8] sm:$0xff] %vm126, %v696
    %699 = vst.msk [vmem:[#allocation8 + $0x8] sm:$0xff] %vm126, %v697
    // Predicated region
    $region34: #{tpu_custom_call.1} parent=1 // pred_check
      _
    $region35: #{tpu_custom_call.1} parent=1 // pred_check_branch
      %701 = sbr.rel (0) target = $region37
    $region36: #{tpu_custom_call.1} parent=1 // pred_region
      %s703 = ssub.s32 256, 256
      %704 = vsyncadd [#allocation4], %s703
      %s705 = sshll.u32 [#allocation8], 4
      %s706 = int_to_ptr.vmem [resolvable:$true] %s705
      %711 = dma.vmem_to_hbm [thread:$0]  %s706, 256, %s5, [#allocation4], 128, 128, 8
    $region37: #{tpu_custom_call.1} parent=1 // pred_fallthru
      _
    // Predicated region
    $region38: #{tpu_custom_call.1} parent=1 // pred_check
      _
    $region39: #{tpu_custom_call.1} parent=1 // pred_check_branch
      %713 = sbr.rel (0) target = $region41
    $region40: #{tpu_custom_call.1} parent=1 // pred_region
      %714 = dma.done [#allocation4], 256
    $region41: #{tpu_custom_call.1} parent=1 // pred_fallthru
      _
    %715 = vsyncpa [#allocation3], 1
    %716 = vsyncpa [#allocation6], 1
    %717 = vsyncpa [#allocation4], 1

</llo_original>
